<compile_context>
chip_gen: v5e
topology: v5e:2x2
jax: 0.10.0
libtpu: 0.0.40
codegen_flags: <defaults>
</compile_context>

<pallas_src>
import math

import numpy as np

import jax
import jax.numpy as jnp
from jax import lax
from jax.experimental import pallas as pl
from jax.experimental.pallas import tpu as pltpu

_SUB, _LANE = 8, 128
_BLOCK = _SUB * _LANE  # 1024 directions per vreg block


def _make_step1_kernel(step_size: float, step_beta: float):
    # numpy scalars become jaxpr literals (NOT captured constants).
    ss = np.float32(step_size)
    sb = np.float32(step_beta)

    def kernel(state_ref, out_ref):
        # state_ref / out_ref : (2,) f32 SMEM -> [beta, action], aliased.
        beta = state_ref[0]
        action = state_ref[1]
        # Evaluate sin on a whole vreg (VPU/EUP path, no scalar transcendental);
        # every lane is identical, so a max-reduce recovers the +/-step_size.
        av = jnp.full((_SUB, _LANE), action, dtype=jnp.float32)
        d = jnp.where(jnp.sin(av) >= 0.0, ss, -ss)
        out_ref[0] = beta + jnp.max(d)
        out_ref[1] = action + sb

    return kernel


def _make_stepn_kernel(step_size: float, step_beta: float):
    ss = np.float32(step_size)
    sb = np.float32(step_beta)

    def kernel(state_ref, nsteps_ref, out_ref):
        # state_ref : (2,) f32 SMEM -> [beta, action]
        # nsteps_ref: (1,) i32 SMEM -> number of fused updates this launch
        n = nsteps_ref[0]
        beta0 = state_ref[0]
        action0 = state_ref[1]

        # k = 0 .. 1023 laid out over one (8,128) vreg.
        row = lax.broadcasted_iota(jnp.int32, (_SUB, _LANE), 0)
        col = lax.broadcasted_iota(jnp.int32, (_SUB, _LANE), 1)
        k_base = row * _LANE + col
        num_blocks = pl.cdiv(n, _BLOCK)

        def body(b, acc):
            k = k_base + b * _BLOCK
            action_k = action0 + k.astype(jnp.float32) * sb
            d = jnp.where(jnp.sin(action_k) >= 0.0, 1.0, -1.0)
            return acc + jnp.where(k < n, d, 0.0)

        # Vector carry: the loop stays entirely on the VPU/EUP path; one
        # XLU reduce at the end.
        acc = lax.fori_loop(0, num_blocks, body,
                            jnp.zeros((_SUB, _LANE), jnp.float32))
        out_ref[0] = beta0 + jnp.sum(acc) * ss
        out_ref[1] = action0 + n.astype(jnp.float32) * sb

    return kernel


def _build_step1_fn(step_size: float, step_beta: float):
    call = pl.pallas_call(
        _make_step1_kernel(step_size, step_beta),
        out_shape=jax.ShapeDtypeStruct((2,), jnp.float32),
        in_specs=[pl.BlockSpec(memory_space=pltpu.SMEM)],      # [beta, action]
        out_specs=pl.BlockSpec(memory_space=pltpu.SMEM),
        input_output_aliases={0: 0},                            # in-place
    )
    return jax.jit(call, donate_argnums=(0,))


def _build_stepn_fn(step_size: float, step_beta: float):
    call = pl.pallas_call(
        _make_stepn_kernel(step_size, step_beta),
        out_shape=jax.ShapeDtypeStruct((2,), jnp.float32),
        in_specs=[pl.BlockSpec(memory_space=pltpu.SMEM),        # [beta, action]
                  pl.BlockSpec(memory_space=pltpu.SMEM)],       # num_steps
        out_specs=pl.BlockSpec(memory_space=pltpu.SMEM),
        input_output_aliases={0: 0},                            # in-place
    )
    return jax.jit(call, donate_argnums=(0,))


class Beta:
    """JAX/Pallas port of the PyTorch `Beta` module."""

    def __init__(self, alpha=10, step_size=0.01):
        self.alpha = alpha
        self.step_size = float(step_size)
        self.step_beta = math.pi / (alpha / step_size)
        # Fused state buffer: [beta, action] = [1.0, 0.0] (torch buffer init).
        self.state = jnp.array([1.0, 0.0], dtype=jnp.float32)
        self._step1 = _build_step1_fn(self.step_size, self.step_beta)
        self._stepn = _build_stepn_fn(self.step_size, self.step_beta)
        # Cache of step-count scalars to avoid per-call H2D transfers.
        self._nsteps_cache = {}
        # Host mirror of beta so forward() doesn't force a D2H sync per call.
        self._beta_host = 1.0
        self._beta_dirty = False

    def forward(self):
        # torch: `return self.beta.item()` — host scalar read, no kernel.
        if self._beta_dirty:
            self._beta_host = float(self.state[0])
            self._beta_dirty = False
        return self._beta_host

    def __call__(self):
        return self.forward()

    def step(self, num_steps: int = 1):
        if num_steps <= 0:
            return
        if num_steps == 1:
            # Loop-free specialization of the most common call pattern.
            self.state = self._step1(self.state)
        else:
            n = self._nsteps_cache.get(num_steps)
            if n is None:
                n = jnp.full((1,), num_steps, dtype=jnp.int32)
                self._nsteps_cache[num_steps] = n
            self.state = self._stepn(self.state, n)
        self._beta_dirty = True


if __name__ == "__main__":
    # The module consumes no tensor inputs; key kept only for convention.
    _ = jax.random.PRNGKey(0)

    mod = Beta(alpha=10, step_size=0.01)

    # forward() before any stepping: torch buffer init is ones(1).
    assert abs(mod.forward() - 1.0) < 1e-6, "initial beta mismatch"

    # --- Small run: batched kernel (K=3) + single-step kernel, exact check ---
    K = 3
    mod.step(num_steps=K)
    mod.step()
    jax.block_until_ready(mod.state)

    ref_beta, ref_action = 1.0, 0.0
    for _ in range(K + 1):
        direction = 1.0 if math.sin(ref_action) >= 0.0 else -1.0
        ref_beta += direction * mod.step_size
        ref_action += mod.step_beta

    state = np.asarray(mod.state)
    assert abs(float(state[0]) - ref_beta) < 1e-5, (float(state[0]), ref_beta)
    assert abs(float(state[1]) - ref_action) < 1e-5, (float(state[1]), ref_action)
    assert abs(mod.forward() - ref_beta) < 1e-5

    # --- Large run: exercise the multi-block vectorized path (3 vreg blocks).
    # Near sin zero crossings (action = exact multiples of pi, hit here at
    # global steps 1000/2000/3000) the f32 sign test may legitimately differ
    # from the float64 serial reference by one step, so allow a few*step_size
    # of slack on beta; action is analytic and checked tightly.
    K2 = 3000
    mod.step(num_steps=K2)
    jax.block_until_ready(mod.state)
    for _ in range(K2):
        direction = 1.0 if math.sin(ref_action) >= 0.0 else -1.0
        ref_beta += direction * mod.step_size
        ref_action += mod.step_beta

    state = np.asarray(mod.state)
    assert abs(float(state[0]) - ref_beta) < 0.1, (float(state[0]), ref_beta)
    assert abs(float(state[1]) - ref_action) < 1e-3 * abs(ref_action) + 1e-4, (
        float(state[1]), ref_action)
    assert abs(mod.forward() - float(state[0])) < 1e-6

    print("KERNEL_OK")
</pallas_src>

<mosaic_0001>
module attributes {stable_mosaic.version = 11 : i64} {
  func.func @kernel(%arg0: memref<2xf32, #tpu.memory_space<smem>>, %arg1: memref<1xi32, #tpu.memory_space<smem>>, %arg2: memref<2xf32, #tpu.memory_space<smem>>) attributes {dimension_semantics = [], scalar_prefetch = 0 : i64, scratch_operands = 0 : i64, tpu.core_type = #tpu.core_type<tc>} {
    %c0 = arith.constant 0 : index
    %0 = memref.load %arg1[%c0] : memref<1xi32, #tpu.memory_space<smem>>
    %c0_0 = arith.constant 0 : index
    %1 = memref.load %arg0[%c0_0] : memref<2xf32, #tpu.memory_space<smem>>
    %c1 = arith.constant 1 : index
    %2 = memref.load %arg0[%c1] : memref<2xf32, #tpu.memory_space<smem>>
    %3 = tpu.iota {dimensions = array<i32: 0>} : vector<8x128xi32>
    %4 = tpu.iota {dimensions = array<i32: 1>} : vector<8x128xi32>
    %c128_i32 = arith.constant 128 : i32
    %5 = vector.broadcast %c128_i32 : i32 to vector<8x128xi32>
    %6 = arith.muli %3, %5 : vector<8x128xi32>
    %7 = arith.addi %6, %4 : vector<8x128xi32>
    %c1023_i32 = arith.constant 1023 : i32
    %8 = arith.addi %0, %c1023_i32 : i32
    %c1024_i32 = arith.constant 1024 : i32
    %9 = arith.divsi %8, %c1024_i32 : i32
    %cst = arith.constant 0.000000e+00 : f32
    %10 = vector.broadcast %cst : f32 to vector<8x128xf32>
    %c0_i32 = arith.constant 0 : i32
    %11 = arith.subi %9, %c0_i32 : i32
    %12 = arith.addi %c0_i32, %11 : i32
    %c1_i32 = arith.constant 1 : i32
    %13 = scf.for %arg3 = %c0_i32 to %12 step %c1_i32 iter_args(%arg4 = %10) -> (vector<8x128xf32>)  : i32 {
      %c1024_i32_6 = arith.constant 1024 : i32
      %25 = arith.muli %arg3, %c1024_i32_6 : i32
      %26 = vector.broadcast %25 : i32 to vector<8x128xi32>
      %27 = arith.addi %7, %26 : vector<8x128xi32>
      %28 = arith.sitofp %27 : vector<8x128xi32> to vector<8x128xf32>
      %cst_7 = arith.constant 0.00314159272 : f32
      %29 = vector.broadcast %cst_7 : f32 to vector<8x128xf32>
      %30 = arith.mulf %28, %29 : vector<8x128xf32>
      %31 = vector.broadcast %2 : f32 to vector<8x128xf32>
      %32 = arith.addf %31, %30 : vector<8x128xf32>
      %33 = math.sin %32 : vector<8x128xf32>
      %cst_8 = arith.constant 0.000000e+00 : f32
      %34 = vector.broadcast %cst_8 : f32 to vector<8x128xf32>
      %35 = arith.cmpf oge, %33, %34 : vector<8x128xf32>
      %cst_9 = arith.constant 1.000000e+00 : f32
      %cst_10 = arith.constant -1.000000e+00 : f32
      %36 = vector.broadcast %cst_9 : f32 to vector<8x128xf32>
      %37 = vector.broadcast %cst_10 : f32 to vector<8x128xf32>
      %38 = arith.select %35, %36, %37 : vector<8x128xi1>, vector<8x128xf32>
      %39 = vector.broadcast %0 : i32 to vector<8x128xi32>
      %40 = arith.cmpi slt, %27, %39 : vector<8x128xi32>
      %cst_11 = arith.constant 0.000000e+00 : f32
      %41 = vector.broadcast %cst_11 : f32 to vector<8x128xf32>
      %42 = arith.select %40, %38, %41 : vector<8x128xi1>, vector<8x128xf32>
      %43 = arith.addf %arg4, %42 : vector<8x128xf32>
      scf.yield %43 : vector<8x128xf32>
    }
    %14 = vector.shape_cast %13 : vector<8x128xf32> to vector<1x8x128xf32>
    %cst_1 = arith.constant dense<0.000000e+00> : vector<1xf32>
    %15 = vector.multi_reduction <add>, %14, %cst_1 [1, 2] : vector<1x8x128xf32> to vector<1xf32>
    %16 = vector.shape_cast %15 : vector<1xf32> to vector<1x1x1xf32>
    %17 = vector.extract %16[0, 0, 0] : f32 from vector<1x1x1xf32>
    %cst_2 = arith.constant 0.00999999977 : f32
    %18 = arith.mulf %17, %cst_2 : f32
    %19 = arith.addf %1, %18 : f32
    %c0_3 = arith.constant 0 : index
    %20 = memref.load %arg2[%c0_3] : memref<2xf32, #tpu.memory_space<smem>>
    memref.store %19, %arg2[%c0_3] : memref<2xf32, #tpu.memory_space<smem>>
    %21 = arith.sitofp %0 : i32 to f32
    %cst_4 = arith.constant 0.00314159272 : f32
    %22 = arith.mulf %21, %cst_4 : f32
    %23 = arith.addf %2, %22 : f32
    %c1_5 = arith.constant 1 : index
    %24 = memref.load %arg2[%c1_5] : memref<2xf32, #tpu.memory_space<smem>>
    memref.store %23, %arg2[%c1_5] : memref<2xf32, #tpu.memory_space<smem>>
    return
  }
}

</mosaic_0001>

<llo_original>
// kernel: tpu_custom_call.1
$region0: #{tpu_custom_call.1}
  #allocation0 [shape = 'u32[]', space=smem, size = 0x4, offset = 0x4, fixed_abs, tag = 'smem constant byte address 0x4 - core index']
  #allocation1 [shape = 'u32[72,128]{1,0:T(1,128)}', space=vmem, size = 0x9000, scoped, tag = 'internal scratch']
  #allocation2 [shape = 's32[1]{0:T(128)S(6)}', space=smem, size = 0x200, scoped, tag = 'scoped memory for tpu_custom_call.1']
  %s0 = inlined_call_operand.hbm [shape: f32[2], index: 0, kind: input, shape index: {}, may-alias: {0,2}]
  %s1 = inlined_call_operand.<no memory space> [shape: s32[1], index: 1, kind: input, shape index: {}]
  %s2 = inlined_call_operand.hbm [shape: f32[2], index: 2, kind: output, shape index: {}, may-alias: {0,2}]
  %s3 = sld [smem:[#allocation0]]
  $region29: #{tpu_custom_call.1} parent=0
    _
  %s5 = ssub.s32 1, %s3
  %s6 = scalar_select 0, %s5, %s3
  %7 = sst [smem:[#allocation2]] %s1
  $region1: #{tpu_custom_call.1} parent=0
    #allocation3 [shape = 'u8[512]{0}', space=smem, size = 0x200, scoped, tag = 'input window, operand 0, single buffered']
    #allocation4 [shape = 's32[1]{0}', space=sflag, size = 0x4, scoped, tag = 'scoped memory for tpu_custom_call.1']
    #allocation5 [shape = 's32[1]{0}', space=sflag, size = 0x4, scoped, tag = 'scoped memory for tpu_custom_call.1']
    #allocation6 [shape = 'u8[512]{0}', space=smem, size = 0x200, scoped, tag = 'output window, operand 0, single buffered']
    %8 = vsyncpa [#allocation4], 0
    %9 = vsyncpa [#allocation5], 0
    // Predicated region
    $region2: #{tpu_custom_call.1} parent=1 // pred_check
      _
    $region3: #{tpu_custom_call.1} parent=1 // pred_check_branch
      %11 = sbr.rel (0) target = $region5
    $region4: #{tpu_custom_call.1} parent=1 // pred_region
      %13 = vsyncadd [#allocation4], 0
      %s15 = sshll.u32 %s0, 4
      %s16 = int_to_ptr.hbm [resolvable:$true] %s15
      %18 = dma.hbm_to_smem %s16, 16, [#allocation3], [#allocation4]
    $region5: #{tpu_custom_call.1} parent=1 // pred_fallthru
      _
    // Predicated region
    $region6: #{tpu_custom_call.1} parent=1 // pred_check
      _
    $region7: #{tpu_custom_call.1} parent=1 // pred_check_branch
      %20 = sbr.rel (0) target = $region9
    $region8: #{tpu_custom_call.1} parent=1 // pred_region
      _
    $region9: #{tpu_custom_call.1} parent=1 // pred_fallthru
      _
    // Predicated region
    $region10: #{tpu_custom_call.1} parent=1 // pred_check
      _
    $region11: #{tpu_custom_call.1} parent=1 // pred_check_branch
      %22 = sbr.rel (0) target = $region13
    $region12: #{tpu_custom_call.1} parent=1 // pred_region
      %24 = dma.done [#allocation4], 16
    $region13: #{tpu_custom_call.1} parent=1 // pred_fallthru
      _
    %25 = sfence
    %s26 = sld [smem:[#allocation2]]
    %s27 = sld [smem:[#allocation3]]
    %s28 = sld [smem:[#allocation3 + $0x1]]
    %v29 = vlaneseq
    %v30 = vshrl.u32 %v29, 7
    %v31 = vlaneseq
    %v32 = vand.u32 %v31, 127
    %v33 = vmul.u32 %v30, 128
    %v34 = vadd.s32 %v33, %v32
    %s35 = sadd.s32 %s26, 1023
    %p36 = scmp.lt.s32.totalorder %s35, 0
    %s37 = ssub.s32 0, %s35
    %s38 = scalar_select %p36, %s37, %s35
    %s39 = sshrl.u32 %s38, 10
    %s40 = ssub.s32 0, %s39
    %s41 = scalar_select %p36, %s40, %s39
    // While loop
    $region14: #{tpu_custom_call.1} parent=1 // loop_pre_header
      _
    $region15: #{tpu_custom_call.1} parent=1 // loop_header
      %s43 = sphi 0, %s45
      %p44 = scmp.ge.s32.totalorder %s43, %s41
      %v48 = vphi 0.0, %v216
    $region16: #{tpu_custom_call.1} parent=1 // loop_header_branch
      %47 = sbr.rel (%p44) target = $region20
    $region17: #{tpu_custom_call.1} parent=1 // loop_body
      %s49 = smul.u32 %s43, 1024
      %v50 = vstv %s49
      %v51 = vadd.s32 %v34, %v50
      %v52 = vcvt.s32.f32 %v51
      %v53 = vmul.f32 %v52, 0.0031415927
      %v54 = vstv %s28
      %v55 = vadd.f32 %v54, %v53
      %v56 = vand.u32 2147483647, %v55
      %vm57 = vcmp.le.f32.partialorder %v56, 0.7853982
      %vm58 = vcmp.lt.s32.totalorder %v55, 0
      %v59 = vand.u32 %v55, 2139095040
      %v60 = vshrl.u32 %v59, 23
      %v61 = vsub.s32 %v60, 127
      %v62 = vand.u32 2147483647, %v55
      %v63 = vand.u32 %v62, 8388607
      %v64 = vor.u32 %v63, 8388608
      %v65 = vsub.s32 0, %v64
      %v66 = vadd.s32 %v61, 1
      %vm67 = vcmp.gt.s32.totalorder %v66, 0
      %v68 = vsel %vm67, %v66, 0
      %v69 = vshrl.u32 %v68, 5
      %v70 = vand.u32 %v68, 31
      %v71 = vsub.s32 32, %v70
      %v72 = vshrl.u32 683565275, %v71
      %v73 = vshll.u32 683565275, %v70
      %v74 = vshrl.u32 2475754826, %v71
      %v75 = vor.u32 %v73, %v74
      %v76 = vshll.u32 2475754826, %v70
      %v77 = vshrl.u32 2131351028, %v71
      %v78 = vor.u32 %v76, %v77
      %v79 = vshll.u32 2131351028, %v70
      %v80 = vshrl.u32 2102212464, %v71
      %v81 = vor.u32 %v79, %v80
      %v82 = vshll.u32 2102212464, %v70
      %v83 = vshrl.u32 920167782, %v71
      %v84 = vor.u32 %v82, %v83
      %v85 = vshll.u32 920167782, %v70
      %v86 = vshrl.u32 1326507024, %v71
      %v87 = vor.u32 %v85, %v86
      %vm88 = vcmp.lt.s32.totalorder %v69, 1
      %vm89 = vcmp.lt.s32.totalorder %v69, 2
      %vm90 = vcmp.lt.s32.totalorder %v69, 3
      %vm91 = vcmp.lt.s32.totalorder %v69, 4
      %v92 = vsel %vm88, %v72, %v75
      %v93 = vsel %vm91, %v81, 2102212464
      %v94 = vsel %vm90, %v78, %v93
      %v95 = vsel %vm89, %v92, %v94
      %v96 = vsel %vm88, %v75, %v78
      %v97 = vsel %vm91, %v84, 920167782
      %v98 = vsel %vm90, %v81, %v97
      %v99 = vsel %vm89, %v96, %v98
      %v100 = vsel %vm88, %v78, %v81
      %v101 = vsel %vm91, %v87, 1326507024
      %v102 = vsel %vm90, %v84, %v101
      %v103 = vsel %vm89, %v100, %v102
      %v104 = vshll.u32 %v64, 8
      %v105 = vand.u32 %v104, 65535
      %v106 = vshrl.u32 %v104, 16
      %v107 = vand.u32 %v103, 65535
      %v108 = vshrl.u32 %v103, 16
      %v109 = vmul.u32 %v105, %v107
      %v110 = vmul.u32 %v105, %v108
      %v111 = vmul.u32 %v106, %v107
      %v112 = vmul.u32 %v106, %v108
      %v113 = vshll.u32 %v110, 16
      %v114 = vshrl.u32 %v110, 16
      %v115 = vshll.u32 %v111, 16
      %v116 = vshrl.u32 %v111, 16
      %vm117 = vc.u32 %v109, %v113
      %v118 = vsel %vm117, 1, 0
      %v119 = vadd.s32 %v109, %v113
      %v120 = vadd.s32 %v112, %v118
      %vm121 = vc.u32 %v119, %v115
      %v122 = vsel %vm121, 1, 0
      %v123 = vadd.s32 %v119, %v115
      %v124 = vadd.s32 %v120, %v122
      %v125 = vadd.s32 %v124, %v114
      %v126 = vadd.s32 %v125, %v116
      %v127 = vand.u32 %v104, 65535
      %v128 = vshrl.u32 %v104, 16
      %v129 = vand.u32 %v99, 65535
      %v130 = vshrl.u32 %v99, 16
      %v131 = vmul.u32 %v127, %v129
      %v132 = vmul.u32 %v127, %v130
      %v133 = vmul.u32 %v128, %v129
      %v134 = vmul.u32 %v128, %v130
      %v135 = vshll.u32 %v132, 16
      %v136 = vshrl.u32 %v132, 16
      %v137 = vshll.u32 %v133, 16
      %v138 = vshrl.u32 %v133, 16
      %vm139 = vc.u32 %v131, %v135
      %v140 = vsel %vm139, 1, 0
      %v141 = vadd.s32 %v131, %v135
      %v142 = vadd.s32 %v134, %v140
      %vm143 = vc.u32 %v141, %v137
      %v144 = vsel %vm143, 1, 0
      %v145 = vadd.s32 %v141, %v137
      %v146 = vadd.s32 %v142, %v144
      %v147 = vadd.s32 %v146, %v136
      %v148 = vadd.s32 %v147, %v138
      %v149 = vmul.u32 %v104, %v95
      %v150 = vadd.s32 %v126, %v145
      %vm151 = vc.u32 %v126, %v145
      %v152 = vadd.s32 %v148, 1
      %v153 = vsel %vm151, %v152, %v148
      %v154 = vadd.s32 %v149, %v153
      %v155 = vadd.s32 %v154, 536870912
      %v156 = vshrl.u32 %v155, 30
      %v157 = vshll.u32 %v156, 30
      %v158 = vsub.s32 %v154, %v157
      %vm159 = vcmp.lt.s32.totalorder %v158, 0
      %v160 = vsub.s32 0, %v158
      %v161 = vsel %vm159, %v160, %v158
      %v162 = vclz %v161
      %v163 = vsub.s32 %v162, 2
      %vm164 = vcmp.gt.s32.totalorder 0, %v163
      %v165 = vsel %vm164, 0, %v163
      %v166 = vsub.s32 32, %v165
      %v167 = vshll.u32 %v158, %v165
      %v168 = vshrl.u32 %v150, %v166
      %v169 = vor.u32 %v167, %v168
      %v170 = vsub.s32 4294967266, %v165
      %v171 = vadd.s32 %v170, 127
      %v172 = vshll.u32 %v171, 23
      %v173 = vor.u32 4788187, %v172
      %v174 = vand.u32 2147483647, %v173
      %v176 = vcvt.s32.f32 %v169
      %v177 = vmul.f32 %v176, %v174
      %v178 = vxor.u32 %v177, 2147483648
      %v179 = vsel %vm58, %v178, %v177
      %v180 = vsub.s32 4, %v156
      %v181 = vsel %vm58, %v180, %v156
      %v182 = vsel %vm57, %v55, %v179
      %v183 = vsel %vm57, 0, %v181
      %v184 = vmul.f32 %v182, %v182
      %v185 = vmul.f32 %v184, -0.001358992
      %v186 = vadd.f32 %v185, 0.041655596
      %v187 = vmul.f32 %v184, %v186
      %v188 = vadd.f32 %v187, -0.4999988
      %v189 = vmul.f32 %v184, %v188
      %v190 = vadd.f32 1.0, %v189
      %v191 = vmul.f32 %v182, %v182
      %v192 = vmul.f32 %v191, -0.00019511016
      %v193 = vadd.f32 %v192, 0.008332121
      %v194 = vmul.f32 %v191, %v193
      %v195 = vadd.f32 %v194, -0.16666654
      %v196 = vmul.f32 %v191, %v195
      %v197 = vadd.f32 %v196, 1.0
      %v198 = vmul.f32 %v197, %v182
      %vm199 = vweird.f32 %v55
      %v200 = vadd.s32 %v183, 3
      %v201 = vand.u32 %v200, 3
      %vm202 = vcmp.lt.s32.totalorder %v201, 2
      %vm203 = vcmp.eq.s32.totalorder %v201, 0
      %v204 = vxor.u32 %v198, 2147483648
      %v205 = vsel %vm203, %v190, %v204
      %vm206 = vcmp.eq.s32.totalorder %v201, 2
      %v207 = vxor.u32 %v190, 2147483648
      %v208 = vsel %vm206, %v207, %v198
      %v209 = vsel %vm202, %v205, %v208
      %v210 = vsel %vm199, nan, %v209
      %vm211 = vcmp.ge.f32.partialorder %v210, 0.0
      %v212 = vsel %vm211, 1.0, -1.0
      %v213 = vstv %s26
      %vm214 = vcmp.lt.s32.totalorder %v51, %v213
      %v215 = vsel %vm214, %v212, 0.0
      %v216 = vadd.f32 %v48, %v215
    $region18: #{tpu_custom_call.1} parent=1 // loop_footer
      %s45 = sadd.s32 %s43, 1
    $region19: #{tpu_custom_call.1} parent=1 // loop_footer_branch
      %42 = sbr.rel target = $region15
    $region20: #{tpu_custom_call.1} parent=1 // loop_exit
      _
    %217 = vadd.xlane.f32.xlu0 %v48
    %v218 = vpop.xlane.xlu0 %217
    %v219 = vrot.slane %v218, 4
    %v220 = vadd.f32 %v218, %v219
    %v221 = vrot.slane %v220, 2
    %v222 = vadd.f32 %v220, %v221
    %v223 = vrot.slane %v222, 1
    %v224 = vadd.f32 %v222, %v223
    %s225 = vtos %v224
    %s226 = smul.f32 %s225, 0.01
    %s227 = sadd.f32 %s27, %s226
    %s228 = scalar_lea.smem [#allocation6], 0
    %229 = sst [smem:[%s228]] %s227
    %s230 = scvt.s32.f32 %s26
    %s231 = smul.f32 %s230, 0.0031415927
    %s232 = sadd.f32 %s28, %s231
    %s233 = scalar_lea.smem [#allocation6], 1
    %234 = sst [smem:[%s233]] %s232
    // Predicated region
    $region21: #{tpu_custom_call.1} parent=1 // pred_check
      _
    $region22: #{tpu_custom_call.1} parent=1 // pred_check_branch
      %236 = sbr.rel (0) target = $region24
    $region23: #{tpu_custom_call.1} parent=1 // pred_region
      %238 = vsyncadd [#allocation5], 0
      %s240 = sshll.u32 %s2, 4
      %s241 = int_to_ptr.hbm [resolvable:$true] %s240
      %243 = dma.smem_to_hbm [#allocation6], 16, %s241, [#allocation5]
    $region24: #{tpu_custom_call.1} parent=1 // pred_fallthru
      _
    // Predicated region
    $region25: #{tpu_custom_call.1} parent=1 // pred_check
      _
    $region26: #{tpu_custom_call.1} parent=1 // pred_check_branch
      %245 = sbr.rel (0) target = $region28
    $region27: #{tpu_custom_call.1} parent=1 // pred_region
      %247 = dma.done [#allocation5], 16
    $region28: #{tpu_custom_call.1} parent=1 // pred_fallthru
      _
    %248 = sfence
    %249 = vsyncpa [#allocation4], 1
    %250 = vsyncpa [#allocation5], 1

</llo_original>
